<compile_context>
chip_gen: v7x
topology: tpu7x:2x2x1
jax: 0.10.0
libtpu: 0.0.40
codegen_flags: <defaults>
</compile_context>

<pallas_src>
import jax
import jax.numpy as jnp
import numpy as np
from jax import lax
from jax.experimental import pallas as pl
from jax.experimental.pallas import tpu as pltpu


# ----------------------------- Pallas kernel -----------------------------

def _selfattn_kernel(x_ref, wf_ref, wo_ref, o_ref, theta_ref, phi_ref, g_ref):
    """One (batch b, query-tile qt) grid step.

    x_ref     : (1, C, M)      bf16 full per-batch block (resident across query tiles)
    wf_ref    : (2*C8+C2, C)   bf16 fused theta|phi|g projection weights
    wo_ref    : (C, C2)        bf16 output projection with gamma folded in
    o_ref     : (1, C, TQ)     f32  output query tile (lane-dense store)
    theta_ref : (C8, M)        bf16 scratch: theta (queries) for current batch element
    phi_ref   : (C8, N4)       bf16 scratch: 2x2-pooled phi (keys)
    g_ref     : (C2, N4)       bf16 scratch: 2x2-pooled g   (values)
    """
    qt = pl.program_id(1)
    C8 = phi_ref.shape[0]
    M = x_ref.shape[2]
    TQ = o_ref.shape[2]
    N4 = M // 4

    # ---- once per batch element: fused theta|phi|g projection (+ 2x2 maxpool) ----
    # Chunked over the 4 pool positions (static unroll, compile-time offsets) so the
    # maxpool folds into a running max and no (*, M) intermediate is materialized.
    # N4 is 128-aligned for realistic SAGAN sizes; below that everything is tiny anyway.
    @pl.when(qt == 0)
    def _():
        kv_max = None
        for p in range(4):
            xp = x_ref[0, :, p * N4:(p + 1) * N4]                    # (C, N4) bf16
            proj = jnp.dot(wf_ref[...], xp,
                           preferred_element_type=jnp.float32)       # (2*C8+C2, N4)
            theta_ref[:, p * N4:(p + 1) * N4] = proj[:C8, :].astype(jnp.bfloat16)
            kv = proj[C8:, :]                                         # (C8+C2, N4)
            kv_max = kv if kv_max is None else jnp.maximum(kv_max, kv)
        phi_ref[...] = kv_max[:C8, :].astype(jnp.bfloat16)
        g_ref[...] = kv_max[C8:, :].astype(jnp.bfloat16)

    # ---- per query tile: attention from bf16-resident scratch ----
    q0 = pl.multiple_of(qt * TQ, TQ)
    theta_q = theta_ref[:, pl.ds(q0, TQ)]                            # (C8, TQ) bf16

    # logits[k, q] = sum_d phi[d, k] * theta[d, q]   (contract channel dim 0 of both)
    logits = lax.dot_general(
        phi_ref[...], theta_q,
        (((0,), (0,)), ((), ())),
        preferred_element_type=jnp.float32)                          # (N4, TQ) f32

    # softmax over keys (sublane axis 0), kept f32 (portable to v5e); single bf16 cast
    # of e feeds the value matmul.
    logits = logits - jnp.max(logits, axis=0, keepdims=True)
    e = jnp.exp(logits)
    denom = jnp.sum(e, axis=0, keepdims=True)                        # (1, TQ)

    # un-normalized weighted sum of pooled values, then normalize (fewer multiplies)
    attn_g = jnp.dot(g_ref[...], e.astype(jnp.bfloat16),
                     preferred_element_type=jnp.float32)             # (C2, TQ)
    attn_g = attn_g * pl.reciprocal(denom, approx=True)

    # output 1x1 conv (gamma pre-folded into wo) + residual (f32 add on upcast bf16 x)
    o = jnp.dot(wo_ref[...], attn_g.astype(jnp.bfloat16),
                preferred_element_type=jnp.float32)                  # (C, TQ)
    xq = x_ref[0, :, pl.ds(q0, TQ)].astype(jnp.float32)              # (C, TQ)
    o_ref[0] = (xq + o).astype(o_ref.dtype)


# ----------------------------- Wrapper (glue) -----------------------------

def _pick_query_tile(m, n4, vmem_budget_bytes=12 * 1024 * 1024):
    """Largest lane-aligned tile dividing M whose (N4, TQ) softmax intermediates
    (logits f32 + e f32 + e bf16 ~= 10 B/elem) fit the per-tile VMEM budget
    (keeps the same kernel inside v7x's 64 MiB VMEM at large H*W)."""
    for t in (1024, 512, 256, 128):
        if t <= m and m % t == 0 and n4 * t * 10 <= vmem_budget_bytes:
            return t
    return m  # small / odd M: single (possibly lane-masked) tile


@jax.jit
def self_attn_pallas(x_nchw, wt, wp, wg, wo, gamma):
    B, C, H, W = x_nchw.shape
    assert C % 8 == 0 and H % 2 == 0 and W % 2 == 0
    M = H * W
    N4 = M // 4
    C8 = C // 8
    C2 = C // 2
    TQ = _pick_query_tile(M, N4)
    num_qt = M // TQ

    # NCHW -> (B, C, M) with m = p*N4 + n (pool-position-major; see header comment),
    # cast to bf16 (halves x HBM traffic + VMEM residency; compute paths were bf16 anyway).
    # TODO(synk): take NHWC input and fold this unfold/refold into the BlockSpecs
    # (strided reads) to avoid the two extra HBM passes over x.
    xr = x_nchw.reshape(B, C, H // 2, 2, W // 2, 2)
    xr = jnp.transpose(xr, (0, 1, 3, 5, 2, 4)).reshape(B, C, M).astype(jnp.bfloat16)

    # Weight prep: fuse theta|phi|g, fold gamma into the output projection, bf16 MXU inputs.
    wf_b = jnp.concatenate([wt, wp, wg], axis=0).astype(jnp.bfloat16)  # (2*C8+C2, C)
    wo_b = (gamma[0] * wo).astype(jnp.bfloat16)                        # (C, C2)

    grid_spec = pltpu.PrefetchScalarGridSpec(
        num_scalar_prefetch=0,
        grid=(B, num_qt),
        in_specs=[
            pl.BlockSpec((1, C, M), lambda b, q: (b, 0, 0)),   # full x, resident per b
            pl.BlockSpec((2 * C8 + C2, C), lambda b, q: (0, 0)),
            pl.BlockSpec((C, C2), lambda b, q: (0, 0)),
        ],
        out_specs=pl.BlockSpec((1, C, TQ), lambda b, q: (b, 0, q)),
        scratch_shapes=[
            pltpu.VMEM((C8, M), jnp.bfloat16),   # theta (queries)
            pltpu.VMEM((C8, N4), jnp.bfloat16),  # pooled phi (keys)
            pltpu.VMEM((C2, N4), jnp.bfloat16),  # pooled g   (values)
        ],
    )

    # TODO(synk): output could be emitted in bf16 (halves writeback) if the consumer
    # tolerates it; kept f32 to match the module's dtype.
    out_flat = pl.pallas_call(
        _selfattn_kernel,
        out_shape=jax.ShapeDtypeStruct((B, C, M), jnp.float32),
        grid_spec=grid_spec,
        compiler_params=pltpu.CompilerParams(
            # qt axis MUST stay sequential ("arbitrary"): it carries the per-b scratch.
            dimension_semantics=("parallel", "arbitrary"),
            vmem_limit_bytes=48 * 1024 * 1024,  # fits v7x (64 MiB) with headroom; ample on v5e/v6e
        ),
    )(xr, wf_b, wo_b)

    # (B, C, M) -> NCHW (inverse of the reorder above)
    out = out_flat.reshape(B, C, 2, 2, H // 2, W // 2)
    out = jnp.transpose(out, (0, 1, 4, 2, 5, 3)).reshape(B, C, H, W)
    return out


# ----------------------------- Parameter setup -----------------------------

def spectral_normalize(w, n_iter=30, eps=1e-12):
    """w: (out, in). Return w / sigma_max, sigma estimated by deterministic power iteration."""
    out_dim = w.shape[0]
    u = jnp.ones((out_dim,), jnp.float32) / jnp.sqrt(float(out_dim))
    v = None
    for _ in range(n_iter):
        v = w.T @ u
        v = v / (jnp.linalg.norm(v) + eps)
        u = w @ v
        u = u / (jnp.linalg.norm(u) + eps)
    sigma = u @ (w @ v)
    return w / sigma


# ----------------------------- Pure-JAX reference (for verification) -----------------------------

def self_attn_ref(x, wt, wp, wg, wo, gamma):
    B, C, H, W = x.shape

    def conv1x1(t, w):  # w: (out, in)
        return jnp.einsum('oc,bchw->bohw', w, t)

    def maxpool2(t):
        b, c, h, w = t.shape
        return t.reshape(b, c, h // 2, 2, w // 2, 2).max(axis=(3, 5))

    theta = conv1x1(x, wt).reshape(B, C // 8, H * W)
    phi = maxpool2(conv1x1(x, wp)).reshape(B, C // 8, H * W // 4)
    attn = jax.nn.softmax(jnp.einsum('bcn,bcm->bnm', theta, phi), axis=-1)
    g = maxpool2(conv1x1(x, wg)).reshape(B, C // 2, H * W // 4)
    attn_g = jnp.einsum('bcm,bnm->bcn', g, attn).reshape(B, C // 2, H, W)
    attn_g = conv1x1(attn_g, wo)
    return x + gamma[0] * attn_g


# ----------------------------- Main -----------------------------

if __name__ == "__main__":
    B, C, H, W = 2, 32, 16, 16            # in_channels must be divisible by 8
    key = jax.random.PRNGKey(0)
    kx, k1, k2, k3, k4 = jax.random.split(key, 5)

    x = jax.random.normal(kx, (B, C, H, W), jnp.float32)

    # conv weights, torch layout (out, in) for 1x1 kernels, spectrally normalized
    w_theta = spectral_normalize(jax.random.normal(k1, (C // 8, C), jnp.float32) * 0.1)
    w_phi   = spectral_normalize(jax.random.normal(k2, (C // 8, C), jnp.float32) * 0.1)
    w_g     = spectral_normalize(jax.random.normal(k3, (C // 2, C), jnp.float32) * 0.1)
    w_o     = spectral_normalize(jax.random.normal(k4, (C, C // 2), jnp.float32) * 0.1)

    # NOTE: torch initializes gamma to 0 (residual-only output); use a nonzero deterministic
    # value here so the attention path is actually exercised/verified.
    gamma = jnp.array([0.75], jnp.float32)

    out = self_attn_pallas(x, w_theta, w_phi, w_g, w_o, gamma)
    out = jax.block_until_ready(out)

    ref = self_attn_ref(x, w_theta, w_phi, w_g, w_o, gamma)
    # bf16 MXU inputs + bf16 x (residual) + approx reciprocal -> relaxed tolerance vs f32 ref.
    np.testing.assert_allclose(np.asarray(out), np.asarray(ref), rtol=3e-2, atol=3e-2)

    print("KERNEL_OK")
</pallas_src>

<mosaic_0001>
module attributes {stable_mosaic.version = 11 : i64} {
  func.func @_selfattn_kernel(%arg0: i32, %arg1: i32, %arg2: memref<1x32x256xbf16, #tpu.memory_space<vmem>>, %arg3: memref<24x32xbf16, #tpu.memory_space<vmem>>, %arg4: memref<32x16xbf16, #tpu.memory_space<vmem>>, %arg5: memref<1x32x256xf32, #tpu.memory_space<vmem>>, %arg6: memref<4x256xbf16, #tpu.memory_space<vmem>>, %arg7: memref<4x64xbf16, #tpu.memory_space<vmem>>, %arg8: memref<16x64xbf16, #tpu.memory_space<vmem>>) attributes {dimension_semantics = [#tpu.dimension_semantics<parallel>, #tpu.dimension_semantics<arbitrary>], iteration_bounds = array<i64: 2, 1>, scalar_prefetch = 0 : i64, scratch_operands = 3 : i64, tpu.core_type = #tpu.core_type<tc>, window_params = [{transform_indices = @transform_0, window_bounds = array<i64: 1, 32, 256>}, {pipeline_mode = #tpu.pipeline_mode<synchronous>, transform_indices = @transform_1, window_bounds = array<i64: 24, 32>}, {pipeline_mode = #tpu.pipeline_mode<synchronous>, transform_indices = @transform_2, window_bounds = array<i64: 32, 16>}, {transform_indices = @transform_3, window_bounds = array<i64: 1, 32, 256>}]} {
    %c0_i32 = arith.constant 0 : i32
    %0 = arith.cmpi eq, %arg1, %c0_i32 : i32
    %1 = arith.extui %0 : i1 to i32
    %c0_i32_0 = arith.constant 0 : i32
    %2 = arith.cmpi ne, %1, %c0_i32_0 : i32
    scf.if %2 {
      %c0_16 = arith.constant 0 : index
      %c0_17 = arith.constant 0 : index
      %c0_18 = arith.constant 0 : index
      %33 = vector.load %arg2[%c0_16, %c0_17, %c0_18] : memref<1x32x256xbf16, #tpu.memory_space<vmem>>, vector<1x32x64xbf16>
      %34 = vector.shape_cast %33 : vector<1x32x64xbf16> to vector<32x64xbf16>
      %c0_19 = arith.constant 0 : index
      %c0_20 = arith.constant 0 : index
      %35 = vector.load %arg3[%c0_19, %c0_20] : memref<24x32xbf16, #tpu.memory_space<vmem>>, vector<24x32xbf16>
      %cst_21 = arith.constant dense<0.000000e+00> : vector<24x64xf32>
      %36 = tpu.matmul %35, %34, %cst_21 {dimension_numbers = #tpu.dot_dimension_numbers<[1], [0], [0], [1], [0, 0, 1, 1], [], []>} : vector<24x32xbf16>, vector<32x64xbf16>, vector<24x64xf32> -> vector<24x64xf32>
      %37 = vector.extract_strided_slice %36 {offsets = [0, 0], sizes = [4, 64], strides = [1, 1]} : vector<24x64xf32> to vector<4x64xf32>
      %38 = arith.truncf %37 : vector<4x64xf32> to vector<4x64xbf16>
      %c0_22 = arith.constant 0 : index
      %c0_23 = arith.constant 0 : index
      %39 = vector.load %arg6[%c0_22, %c0_23] : memref<4x256xbf16, #tpu.memory_space<vmem>>, vector<4x64xbf16>
      tpu.vector_store %arg6[%c0_22, %c0_23], %38 {strides = array<i32>} : memref<4x256xbf16, #tpu.memory_space<vmem>>, vector<4x64xbf16>,
      %40 = vector.extract_strided_slice %36 {offsets = [4, 0], sizes = [20, 64], strides = [1, 1]} : vector<24x64xf32> to vector<20x64xf32>
      %c0_24 = arith.constant 0 : index
      %c0_25 = arith.constant 0 : index
      %c64 = arith.constant 64 : index
      %41 = vector.load %arg2[%c0_24, %c0_25, %c64] : memref<1x32x256xbf16, #tpu.memory_space<vmem>>, vector<1x32x64xbf16>
      %42 = vector.shape_cast %41 : vector<1x32x64xbf16> to vector<32x64xbf16>
      %c0_26 = arith.constant 0 : index
      %c0_27 = arith.constant 0 : index
      %43 = vector.load %arg3[%c0_26, %c0_27] : memref<24x32xbf16, #tpu.memory_space<vmem>>, vector<24x32xbf16>
      %cst_28 = arith.constant dense<0.000000e+00> : vector<24x64xf32>
      %44 = tpu.matmul %43, %42, %cst_28 {dimension_numbers = #tpu.dot_dimension_numbers<[1], [0], [0], [1], [0, 0, 1, 1], [], []>} : vector<24x32xbf16>, vector<32x64xbf16>, vector<24x64xf32> -> vector<24x64xf32>
      %45 = vector.extract_strided_slice %44 {offsets = [0, 0], sizes = [4, 64], strides = [1, 1]} : vector<24x64xf32> to vector<4x64xf32>
      %46 = arith.truncf %45 : vector<4x64xf32> to vector<4x64xbf16>
      %c0_29 = arith.constant 0 : index
      %c64_30 = arith.constant 64 : index
      %47 = vector.load %arg6[%c0_29, %c64_30] : memref<4x256xbf16, #tpu.memory_space<vmem>>, vector<4x64xbf16>
      tpu.vector_store %arg6[%c0_29, %c64_30], %46 {strides = array<i32>} : memref<4x256xbf16, #tpu.memory_space<vmem>>, vector<4x64xbf16>,
      %48 = vector.extract_strided_slice %44 {offsets = [4, 0], sizes = [20, 64], strides = [1, 1]} : vector<24x64xf32> to vector<20x64xf32>
      %49 = arith.maximumf %40, %48 : vector<20x64xf32>
      %c0_31 = arith.constant 0 : index
      %c0_32 = arith.constant 0 : index
      %c128 = arith.constant 128 : index
      %50 = vector.load %arg2[%c0_31, %c0_32, %c128] : memref<1x32x256xbf16, #tpu.memory_space<vmem>>, vector<1x32x64xbf16>
      %51 = vector.shape_cast %50 : vector<1x32x64xbf16> to vector<32x64xbf16>
      %c0_33 = arith.constant 0 : index
      %c0_34 = arith.constant 0 : index
      %52 = vector.load %arg3[%c0_33, %c0_34] : memref<24x32xbf16, #tpu.memory_space<vmem>>, vector<24x32xbf16>
      %cst_35 = arith.constant dense<0.000000e+00> : vector<24x64xf32>
      %53 = tpu.matmul %52, %51, %cst_35 {dimension_numbers = #tpu.dot_dimension_numbers<[1], [0], [0], [1], [0, 0, 1, 1], [], []>} : vector<24x32xbf16>, vector<32x64xbf16>, vector<24x64xf32> -> vector<24x64xf32>
      %54 = vector.extract_strided_slice %53 {offsets = [0, 0], sizes = [4, 64], strides = [1, 1]} : vector<24x64xf32> to vector<4x64xf32>
      %55 = arith.truncf %54 : vector<4x64xf32> to vector<4x64xbf16>
      %c0_36 = arith.constant 0 : index
      %c128_37 = arith.constant 128 : index
      %56 = vector.load %arg6[%c0_36, %c128_37] : memref<4x256xbf16, #tpu.memory_space<vmem>>, vector<4x64xbf16>
      tpu.vector_store %arg6[%c0_36, %c128_37], %55 {strides = array<i32>} : memref<4x256xbf16, #tpu.memory_space<vmem>>, vector<4x64xbf16>,
      %57 = vector.extract_strided_slice %53 {offsets = [4, 0], sizes = [20, 64], strides = [1, 1]} : vector<24x64xf32> to vector<20x64xf32>
      %58 = arith.maximumf %49, %57 : vector<20x64xf32>
      %c0_38 = arith.constant 0 : index
      %c0_39 = arith.constant 0 : index
      %c192 = arith.constant 192 : index
      %59 = vector.load %arg2[%c0_38, %c0_39, %c192] : memref<1x32x256xbf16, #tpu.memory_space<vmem>>, vector<1x32x64xbf16>
      %60 = vector.shape_cast %59 : vector<1x32x64xbf16> to vector<32x64xbf16>
      %c0_40 = arith.constant 0 : index
      %c0_41 = arith.constant 0 : index
      %61 = vector.load %arg3[%c0_40, %c0_41] : memref<24x32xbf16, #tpu.memory_space<vmem>>, vector<24x32xbf16>
      %cst_42 = arith.constant dense<0.000000e+00> : vector<24x64xf32>
      %62 = tpu.matmul %61, %60, %cst_42 {dimension_numbers = #tpu.dot_dimension_numbers<[1], [0], [0], [1], [0, 0, 1, 1], [], []>} : vector<24x32xbf16>, vector<32x64xbf16>, vector<24x64xf32> -> vector<24x64xf32>
      %63 = vector.extract_strided_slice %62 {offsets = [0, 0], sizes = [4, 64], strides = [1, 1]} : vector<24x64xf32> to vector<4x64xf32>
      %64 = arith.truncf %63 : vector<4x64xf32> to vector<4x64xbf16>
      %c0_43 = arith.constant 0 : index
      %c192_44 = arith.constant 192 : index
      %65 = vector.load %arg6[%c0_43, %c192_44] : memref<4x256xbf16, #tpu.memory_space<vmem>>, vector<4x64xbf16>
      tpu.vector_store %arg6[%c0_43, %c192_44], %64 {strides = array<i32>} : memref<4x256xbf16, #tpu.memory_space<vmem>>, vector<4x64xbf16>,
      %66 = vector.extract_strided_slice %62 {offsets = [4, 0], sizes = [20, 64], strides = [1, 1]} : vector<24x64xf32> to vector<20x64xf32>
      %67 = arith.maximumf %58, %66 : vector<20x64xf32>
      %68 = vector.extract_strided_slice %67 {offsets = [0, 0], sizes = [4, 64], strides = [1, 1]} : vector<20x64xf32> to vector<4x64xf32>
      %69 = arith.truncf %68 : vector<4x64xf32> to vector<4x64xbf16>
      %c0_45 = arith.constant 0 : index
      %c0_46 = arith.constant 0 : index
      %70 = vector.load %arg7[%c0_45, %c0_46] : memref<4x64xbf16, #tpu.memory_space<vmem>>, vector<4x64xbf16>
      tpu.vector_store %arg7[%c0_45, %c0_46], %69 {strides = array<i32>} : memref<4x64xbf16, #tpu.memory_space<vmem>>, vector<4x64xbf16>,
      %71 = vector.extract_strided_slice %67 {offsets = [4, 0], sizes = [16, 64], strides = [1, 1]} : vector<20x64xf32> to vector<16x64xf32>
      %72 = arith.truncf %71 : vector<16x64xf32> to vector<16x64xbf16>
      %c0_47 = arith.constant 0 : index
      %c0_48 = arith.constant 0 : index
      %73 = vector.load %arg8[%c0_47, %c0_48] : memref<16x64xbf16, #tpu.memory_space<vmem>>, vector<16x64xbf16>
      tpu.vector_store %arg8[%c0_47, %c0_48], %72 {strides = array<i32>} : memref<16x64xbf16, #tpu.memory_space<vmem>>, vector<16x64xbf16>,
    } else {
    }
    %c256_i32 = arith.constant 256 : i32
    %3 = arith.muli %arg1, %c256_i32 : i32
    %4 = tpu.assume_multiple %3, 256 : i32
    %c0 = arith.constant 0 : index
    %5 = arith.index_cast %4 : i32 to index
    %6 = vector.load %arg6[%c0, %5] : memref<4x256xbf16, #tpu.memory_space<vmem>>, vector<4x256xbf16>
    %c0_1 = arith.constant 0 : index
    %c0_2 = arith.constant 0 : index
    %7 = vector.load %arg7[%c0_1, %c0_2] : memref<4x64xbf16, #tpu.memory_space<vmem>>, vector<4x64xbf16>
    %cst = arith.constant dense<0.000000e+00> : vector<64x256xf32>
    %8 = tpu.matmul %7, %6, %cst {dimension_numbers = #tpu.dot_dimension_numbers<[0], [0], [1], [1], [0, 1, 1, 1], [], []>} : vector<4x64xbf16>, vector<4x256xbf16>, vector<64x256xf32> -> vector<64x256xf32>
    %cst_3 = arith.constant dense<0xFF800000> : vector<256xf32>
    %9 = vector.multi_reduction <maximumf>, %8, %cst_3 [0] : vector<64x256xf32> to vector<256xf32>
    %10 = vector.shape_cast %9 : vector<256xf32> to vector<1x256xf32>
    %11 = vector.broadcast %10 : vector<1x256xf32> to vector<64x256xf32>
    %12 = arith.subf %8, %11 : vector<64x256xf32>
    %13 = math.exp %12 : vector<64x256xf32>
    %cst_4 = arith.constant dense<0.000000e+00> : vector<256xf32>
    %14 = vector.multi_reduction <add>, %13, %cst_4 [0] : vector<64x256xf32> to vector<256xf32>
    %15 = vector.shape_cast %14 : vector<256xf32> to vector<1x256xf32>
    %c0_5 = arith.constant 0 : index
    %c0_6 = arith.constant 0 : index
    %16 = vector.load %arg8[%c0_5, %c0_6] : memref<16x64xbf16, #tpu.memory_space<vmem>>, vector<16x64xbf16>
    %17 = arith.truncf %13 : vector<64x256xf32> to vector<64x256xbf16>
    %cst_7 = arith.constant dense<0.000000e+00> : vector<16x256xf32>
    %18 = tpu.matmul %16, %17, %cst_7 {dimension_numbers = #tpu.dot_dimension_numbers<[1], [0], [0], [1], [0, 0, 1, 1], [], []>} : vector<16x64xbf16>, vector<64x256xbf16>, vector<16x256xf32> -> vector<16x256xf32>
    %19 = tpu.reciprocal %15 {approx = true} : vector<1x256xf32> -> vector<1x256xf32>
    %20 = vector.broadcast %19 : vector<1x256xf32> to vector<16x256xf32>
    %21 = arith.mulf %18, %20 : vector<16x256xf32>
    %c0_8 = arith.constant 0 : index
    %c0_9 = arith.constant 0 : index
    %22 = vector.load %arg4[%c0_8, %c0_9] : memref<32x16xbf16, #tpu.memory_space<vmem>>, vector<32x16xbf16>
    %23 = arith.truncf %21 : vector<16x256xf32> to vector<16x256xbf16>
    %cst_10 = arith.constant dense<0.000000e+00> : vector<32x256xf32>
    %24 = tpu.matmul %22, %23, %cst_10 {dimension_numbers = #tpu.dot_dimension_numbers<[1], [0], [0], [1], [0, 0, 1, 1], [], []>} : vector<32x16xbf16>, vector<16x256xbf16>, vector<32x256xf32> -> vector<32x256xf32>
    %c0_11 = arith.constant 0 : index
    %c0_12 = arith.constant 0 : index
    %25 = arith.index_cast %4 : i32 to index
    %26 = vector.load %arg2[%c0_11, %c0_12, %25] : memref<1x32x256xbf16, #tpu.memory_space<vmem>>, vector<1x32x256xbf16>
    %27 = vector.shape_cast %26 : vector<1x32x256xbf16> to vector<32x256xbf16>
    %28 = arith.extf %27 : vector<32x256xbf16> to vector<32x256xf32>
    %29 = arith.addf %28, %24 : vector<32x256xf32>
    %c0_13 = arith.constant 0 : index
    %c0_14 = arith.constant 0 : index
    %c0_15 = arith.constant 0 : index
    %30 = vector.load %arg5[%c0_13, %c0_14, %c0_15] : memref<1x32x256xf32, #tpu.memory_space<vmem>>, vector<1x32x256xf32>
    %31 = vector.shape_cast %30 : vector<1x32x256xf32> to vector<32x256xf32>
    %32 = vector.shape_cast %29 : vector<32x256xf32> to vector<1x32x256xf32>
    tpu.vector_store %arg5[%c0_13, %c0_14, %c0_15], %32 {strides = array<i32>} : memref<1x32x256xf32, #tpu.memory_space<vmem>>, vector<1x32x256xf32>,
    return
  }
  func.func @transform_0(%arg0: i32, %arg1: i32) -> (i32, i32, i32) {
    %c0_i32 = arith.constant 0 : i32
    %c0_i32_0 = arith.constant 0 : i32
    %c0_i32_1 = arith.constant 0 : i32
    return %arg0, %c0_i32, %c0_i32_0 : i32, i32, i32
  }
  func.func @transform_1(%arg0: i32, %arg1: i32) -> (i32, i32) {
    %c0_i32 = arith.constant 0 : i32
    %c0_i32_0 = arith.constant 0 : i32
    %c0_i32_1 = arith.constant 0 : i32
    return %c0_i32, %c0_i32_0 : i32, i32
  }
  func.func @transform_2(%arg0: i32, %arg1: i32) -> (i32, i32) {
    %c0_i32 = arith.constant 0 : i32
    %c0_i32_0 = arith.constant 0 : i32
    %c0_i32_1 = arith.constant 0 : i32
    return %c0_i32, %c0_i32_0 : i32, i32
  }
  func.func @transform_3(%arg0: i32, %arg1: i32) -> (i32, i32, i32) {
    %c0_i32 = arith.constant 0 : i32
    %c0_i32_0 = arith.constant 0 : i32
    return %arg0, %c0_i32, %arg1 : i32, i32, i32
  }
}

</mosaic_0001>

<llo_original>
// kernel: self_attn_pallas.1
$region0: #{self_attn_pallas.1}
  #allocation0 [shape = 'u32[]', space=smem, size = 0x4, offset = 0x4, fixed_abs, tag = 'smem constant byte address 0x4 - core index']
  #allocation1 [shape = 'u32[144,128]{1,0:T(1,128)}', space=vmem, size = 0x12000, scoped, tag = 'internal scratch']
  #allocation2 [shape = 'bf16[4,256]{1,0:T(4,128)(2,1)}', space=vmem, size = 0x800, scoped, tag = 'scratch operand']
  #allocation3 [shape = 'bf16[4,64]{1,0:T(4,128)(2,1)}', space=vmem, size = 0x400, scoped, tag = 'scratch operand']
  #allocation4 [shape = 'bf16[16,64]{1,0:T(16,128)(2,1)}', space=vmem, size = 0x1000, scoped, tag = 'scratch operand']
  %s0 = inlined_call_operand.vmem [shape: bf16[2,32,256], index: 0, kind: input, shape index: {}]
  %s1 = inlined_call_operand.vmem [shape: bf16[24,32], index: 1, kind: input, shape index: {}]
  %s2 = inlined_call_operand.vmem [shape: bf16[32,16], index: 2, kind: input, shape index: {}]
  %s3 = inlined_call_operand.vmem [shape: f32[2,32,256], index: 3, kind: output, shape index: {}]
  %s4 = sld [smem:[#allocation0]]
  $region49: #{self_attn_pallas.1} parent=0
    _
  %s6 = ssub.s32 1, %s4
  %s7 = scalar_select 0, %s6, %s4
  loop: start=0, step=1, limit=4
  $region2: #{self_attn_pallas.1} parent=0 // loop_pre_header
    _
  $region3: #{self_attn_pallas.1} parent=0 // loop_header
    %s9 = sphi 0, %s13
    %p10 = scmp.ge.s32.totalorder %s9, 4
    %s16 = sphi 0, %s28
    %s17 = sphi 0, %s24
    %s18 = sphi 0, %s16
    %s19 = sphi 0, %s17
    %s20 = sphi 0, %s18
    %s21 = sphi 0, %s19
    %s31 = sphi 0, %s33
    %s34 = sphi 0, %s31
    %s35 = sphi 0, %s34
    %s51 = sphi 0, %s35
    %s55 = sphi 0, %s55
    %s57 = sphi 0, %s55
    %s58 = sphi 0, %s57
    %s72 = sphi 0, %s58
    %s76 = sphi 0, %s76
    %s78 = sphi 0, %s76
    %s79 = sphi 0, %s78
    %s93 = sphi 0, %s79
    %s101 = sphi 0, %s103
    %s104 = sphi 0, %s101
    %s105 = sphi 0, %s104
    %s121 = sphi 0, %s105
  $region4: #{self_attn_pallas.1} parent=0 // loop_header_branch
    %12 = sbr.rel (%p10) target = $region8
  $region5: #{self_attn_pallas.1} parent=0 // loop_body
    %s14 = ssub.s32 %s9, 1
    %s15 = ssub.s32 %s9, 2
    %s22 = sadd.s32 1, %s17
    %p23 = scmp.ge.s32.totalorder %s22, 1
    %s24 = scalar_select %p23, 0, %s22
    %s25 = sadd.s32 1, %s16
    %s26 = scalar_select %p23, %s25, %s16
    %p27 = scmp.ge.s32.totalorder %s26, 2
    %s28 = scalar_select %p27, 0, %s26
    %s29 = ssub.s32 %s16, %s28
    %p30 = scmp.eq.s32.totalorder %s29, 0
    %s32 = sadd.s32 %s31, 1
    %s33 = scalar_select %p30, %s31, %s32
    %p36 = pneg %p30
    %p37 = scmp.eq.s32.totalorder %s9, 1
    %p38 = por %p36, %p37
    %p39 = scmp.ne.s32.totalorder %s31, %s34
    %p40 = scmp.eq.s32.totalorder %s9, 0
    %p41 = por %p39, %p40
    %p42 = scmp.ne.s32.totalorder %s31, %s34
    %p43 = scmp.eq.s32.totalorder %s14, 1
    %p44 = por %p42, %p43
    %p45 = scmp.ne.s32.totalorder %s34, %s35
    %p46 = scmp.eq.s32.totalorder %s14, 0
    %p47 = por %p45, %p46
    %p48 = scmp.ne.s32.totalorder %s34, %s35
    %p49 = scmp.eq.s32.totalorder %s15, 1
    %p50 = por %p48, %p49
    %p52 = scmp.ne.s32.totalorder %s35, %s51
    %p53 = scmp.eq.s32.totalorder %s15, 0
    %p54 = por %p52, %p53
    %s56 = sadd.s32 %s55, 1
    %p59 = scmp.eq.s32.totalorder %s9, 1
    %p60 = scmp.ne.s32.totalorder %s55, %s57
    %p61 = scmp.eq.s32.totalorder %s9, 0
    %p62 = por %p60, %p61
    %p63 = scmp.ne.s32.totalorder %s55, %s57
    %p64 = scmp.eq.s32.totalorder %s14, 1
    %p65 = por %p63, %p64
    %p66 = scmp.ne.s32.totalorder %s57, %s58
    %p67 = scmp.eq.s32.totalorder %s14, 0
    %p68 = por %p66, %p67
    %p69 = scmp.ne.s32.totalorder %s57, %s58
    %p70 = scmp.eq.s32.totalorder %s15, 1
    %p71 = por %p69, %p70
    %p73 = scmp.ne.s32.totalorder %s58, %s72
    %p74 = scmp.eq.s32.totalorder %s15, 0
    %p75 = por %p73, %p74
    %s77 = sadd.s32 %s76, 1
    %p80 = scmp.eq.s32.totalorder %s9, 1
    %p81 = scmp.ne.s32.totalorder %s76, %s78
    %p82 = scmp.eq.s32.totalorder %s9, 0
    %p83 = por %p81, %p82
    %p84 = scmp.ne.s32.totalorder %s76, %s78
    %p85 = scmp.eq.s32.totalorder %s14, 1
    %p86 = por %p84, %p85
    %p87 = scmp.ne.s32.totalorder %s78, %s79
    %p88 = scmp.eq.s32.totalorder %s14, 0
    %p89 = por %p87, %p88
    %p90 = scmp.ne.s32.totalorder %s78, %s79
    %p91 = scmp.eq.s32.totalorder %s15, 1
    %p92 = por %p90, %p91
    %p94 = scmp.ne.s32.totalorder %s79, %s93
    %p95 = scmp.eq.s32.totalorder %s15, 0
    %p96 = por %p94, %p95
    %s97 = ssub.s32 %s16, %s28
    %s98 = ssub.s32 %s17, %s24
    %s99 = sor.u32 %s97, %s98
    %p100 = scmp.eq.s32.totalorder %s99, 0
    %s102 = sadd.s32 %s101, 1
    %s103 = scalar_select %p100, %s101, %s102
    %p106 = pneg %p100
    %p107 = scmp.eq.s32.totalorder %s9, 1
    %p108 = por %p106, %p107
    %p109 = scmp.ne.s32.totalorder %s101, %s104
    %p110 = scmp.eq.s32.totalorder %s9, 0
    %p111 = por %p109, %p110
    %p112 = scmp.ne.s32.totalorder %s101, %s104
    %p113 = scmp.eq.s32.totalorder %s14, 1
    %p114 = por %p112, %p113
    %p115 = scmp.ne.s32.totalorder %s104, %s105
    %p116 = scmp.eq.s32.totalorder %s14, 0
    %p117 = por %p115, %p116
    %p118 = scmp.ne.s32.totalorder %s104, %s105
    %p119 = scmp.eq.s32.totalorder %s15, 1
    %p120 = por %p118, %p119
    %p122 = scmp.ne.s32.totalorder %s105, %s121
    %p123 = scmp.eq.s32.totalorder %s15, 0
    %p124 = por %p122, %p123
    %p125 = scmp.le.s32.totalorder 1, %s9
    %p126 = scmp.lt.s32.totalorder %s9, 3
    %p127 = pnand %p125, %p126
    %p128 = pneg %p127
    // Predicated region
    $region9: #{self_attn_pallas.1} parent=5 // pred_check
      _
    $region10: #{self_attn_pallas.1} parent=5 // pred_check_branch
      %130 = sbr.rel (%p127) target = $region12
    $region11: #{self_attn_pallas.1} parent=5 // pred_region
      %s131 = ssub.s32 %s9, 1
      // Predicated region
      $region13: #{self_attn_pallas.1} parent=11 // pred_check
        %p132 = pneg %p68
      $region14: #{self_attn_pallas.1} parent=11 // pred_check_branch
        %134 = sbr.rel (%p132) target = $region16
      $region15: #{self_attn_pallas.1} parent=11 // pred_region
        _
      $region16: #{self_attn_pallas.1} parent=11 // pred_fallthru
        _
      // Predicated region
      $region17: #{self_attn_pallas.1} parent=11 // pred_check
        %p135 = pneg %p89
      $region18: #{self_attn_pallas.1} parent=11 // pred_check_branch
        %137 = sbr.rel (%p135) target = $region20
      $region19: #{self_attn_pallas.1} parent=11 // pred_region
        _
      $region20: #{self_attn_pallas.1} parent=11 // pred_fallthru
        _
    $region12: #{self_attn_pallas.1} parent=5 // pred_fallthru
      _
    %p138 = scmp.lt.s32.totalorder %s9, 2
    // Predicated region
    $region21: #{self_attn_pallas.1} parent=5 // pred_check
      %p139 = pneg %p138
    $region22: #{self_attn_pallas.1} parent=5 // pred_check_branch
      %141 = sbr.rel (%p139) target = $region24
    $region23: #{self_attn_pallas.1} parent=5 // pred_region
      // Predicated region
      $region25: #{self_attn_pallas.1} parent=23 // pred_check
        %p142 = pneg %p41
      $region26: #{self_attn_pallas.1} parent=23 // pred_check_branch
        %144 = sbr.rel (%p142) target = $region28
      $region27: #{self_attn_pallas.1} parent=23 // pred_region
        %p145 = scmp.lt.s32.totalorder %s16, 1
        %s146 = scalar_select %p145, %s16, 1
        %s147 = smul.addr %s146, 8
        %s148 = smul.addr %s147, 4
        %s149 = scalar_lea.vmem %s0, %s148
      $region28: #{self_attn_pallas.1} parent=23 // pred_fallthru
        _
    $region24: #{self_attn_pallas.1} parent=5 // pred_fallthru
      _
    %p150 = scmp.le.s32.totalorder 1, %s9
    %p151 = scmp.lt.s32.totalorder %s9, 3
    %p152 = pnand %p150, %p151
    %p153 = pneg %p152
    // Predicated region
    $region29: #{self_attn_pallas.1} parent=5 // pred_check
      _
    $region30: #{self_attn_pallas.1} parent=5 // pred_check_branch
      %155 = sbr.rel (%p152) target = $region32
    $region31: #{self_attn_pallas.1} parent=5 // pred_region
      %s156 = ssub.s32 %s9, 1
      %p157 = scmp.lt.s32.totalorder %s18, 1
      %s158 = scalar_select %p157, %s18, 1
      %s159 = smul.addr %s158, 8
      %s160 = smul.addr %s159, 4
      %s161 = scalar_lea.vmem %s0, %s160
      %p162 = pneg %p47
      %p163 = pneg %p44
      %p164 = pneg %p68
      %p165 = pneg %p65
      %p166 = pneg %p89
      %p167 = pneg %p86
      %p168 = pneg %p117
      %p169 = pneg %p114
      %s170 = smul.u32 2, %s19
      %p171 = scmp.lt.s32.totalorder %s18, 1
      %s172 = scalar_select %p171, %s18, 1
      %p173 = scmp.lt.s32.totalorder %s170, 1
      %s174 = scalar_select %p173, %s170, 1
      %s175 = smul.addr %s172, 8
      %s176 = sadd.s32 %s174, %s175
      %s177 = smul.addr %s176, 8
      %s178 = scalar_lea.vmem %s3, %s177
      %p179 = scmp.lt.s32.totalorder %s18, 1
      %s180 = scalar_select %p179, %s18, 1
      %s181 = smul.addr %s180, 8
      %s182 = smul.addr %s181, 4
      %s183 = scalar_lea.vmem %s0, %s182
      %s184 = smul.u32 2, %s19
      %p185 = scmp.lt.s32.totalorder %s18, 1
      %s186 = scalar_select %p185, %s18, 1
      %p187 = scmp.lt.s32.totalorder %s184, 1
      %s188 = scalar_select %p187, %s184, 1
      %s189 = smul.addr %s186, 8
      %s190 = sadd.s32 %s188, %s189
      %s191 = smul.addr %s190, 8
      %s192 = scalar_lea.vmem %s3, %s191
      %s193 = smul.u32 2, %s19
      %p195 = scmp.eq.s32.totalorder %s19, 0
      // Predicated region
      $region33: #{self_attn_pallas.1} parent=31 // pred_check
        %p196 = pneg %p195
      $region34: #{self_attn_pallas.1} parent=31 // pred_check_branch
        %198 = sbr.rel (%p196) target = $region36
      $region35: #{self_attn_pallas.1} parent=31 // pred_region
        %v199 = vld [vmem:[%s183] sm:$0xf]
        %v200 = vld [vmem:[%s183 + $0x8] sm:$0xf]
        %v201 = vld [vmem:[%s183 + $0x10] sm:$0xf]
        %v202 = vld [vmem:[%s183 + $0x18] sm:$0xf]
        %v203 = vld [vmem:[%s1] sm:$0xf]
        %v204 = vld [vmem:[%s1 + $0x4] sm:$0xf]
        %v205 = vld [vmem:[%s1 + $0x8] sm:$0xf]
        %v209 = vunpack.c.l.b16 %v203
        %v210 = vunpack.c.l.b16 %v204
        %v211 = vunpack.c.l.b16 %v205
        %v212 = vpack.c.b16 %v210, %v209
        %v213 = vpack.c.b16 %v211, %v211
        %v218 = vunpack.c.l.b16 %v199
        %v219 = vunpack.c.l.b16 %v200
        %v220 = vunpack.c.l.b16 %v201
        %v221 = vunpack.c.l.b16 %v202
        %v222 = vpack.c.b16 %v219, %v218
        %v223 = vpack.c.b16 %v221, %v220
        %vm226 = vcmask 261120
        %v228 = vsel %vm226, %v212, 0
        %v231 = vsel %vm226, %v213, 0
        %233 = vmatprep.subr.bf16.mxu0 0
        %234 = vmatpush1.bf16.msra.mxu0 %v222
        %235 = vmatprep.subr.bf16.mxu0 0
        %236 = vmatpush1.bf16.msra.mxu0 %v223
        %237 = vmatprep.subr.bf16.mxu0 0
        %238 = vmatpush1.bf16.msra.mxu0 0
        %239 = vmatprep.subr.bf16.mxu0 0
        %240 = vmatpush1.bf16.msra.mxu0 0
        %241 = vmatprep.subr.bf16.mxu0 0
        %242 = vmatpush1.bf16.msra.mxu0 0
        %243 = vmatprep.subr.bf16.mxu0 0
        %244 = vmatpush1.bf16.msra.mxu0 0
        %245 = vmatprep.subr.bf16.mxu0 0
        %246 = vmatpush1.bf16.msra.mxu0 0
        %247 = vmatprep.subr.bf16.mxu0 0
        %248 = vmatpush1.bf16.msra.mxu0 0
        %249 = vmatprep.subr.bf16.mxu0 0
        %250 = vmatpush1.bf16.msra.mxu0 0
        %251 = vmatprep.subr.bf16.mxu0 0
        %252 = vmatpush1.bf16.msra.mxu0 0
        %253 = vmatprep.subr.bf16.mxu0 0
        %254 = vmatpush1.bf16.msra.mxu0 0
        %255 = vmatprep.subr.bf16.mxu0 0
        %256 = vmatpush1.bf16.msra.mxu0 0
        %257 = vmatprep.subr.bf16.mxu0 0
        %258 = vmatpush1.bf16.msra.mxu0 0
        %259 = vmatprep.subr.bf16.mxu0 0
        %260 = vmatpush1.bf16.msra.mxu0 0
        %261 = vmatprep.subr.bf16.mxu0 0
        %262 = vmatpush1.bf16.msra.mxu0 0
        %263 = vmatprep.subr.bf16.mxu0 0
        %264 = vmatpush1.bf16.msra.mxu0 0
        %265 = vmatprep.mubr.bf16.mxu0 0
        %266 = vmatmul.mubr.bf16.gmra.mrb[0].mxu0 %v228
        %v267 = vpop.f32.mrb[0].mxu0
        %v268 = vadd.f32 0.0, %v267
        %v269 = vpop.f32.mrb[0].mxu0
        %v270 = vpop.f32.mrb[0].mxu0
        %v271 = vadd.f32 0.0, %v270
        %v272 = vpop.f32.mrb[0].mxu0
        %273 = vmatprep.mubr.bf16.mxu0 0
        %274 = vmatmul.mubr.bf16.gmra.mrb[0].mxu0 %v231
        %v275 = vpop.f32.mrb[0].mxu0
        %v276 = vadd.f32 0.0, %v275
        %v277 = vpop.f32.mrb[0].mxu0
        %v278 = vpop.f32.mrb[0].mxu0
        %v279 = vpop.f32.mrb[0].mxu0
        %280 = vdwg.mxu0
        %v281 = vpack.c.bf16 %v268, %v268
        %vm282 = vcmask 517120
        %283 = vst.msk [vmem:[#allocation2] sm:$0x3] %vm282, %v281
        %v284 = vld [vmem:[%s183] sm:$0xf]
        %v285 = vld [vmem:[%s183 + $0x8] sm:$0xf]
        %v286 = vld [vmem:[%s183 + $0x10] sm:$0xf]
        %v287 = vld [vmem:[%s183 + $0x18] sm:$0xf]
        %v288 = vld [vmem:[%s1] sm:$0xf]
        %v289 = vld [vmem:[%s1 + $0x4] sm:$0xf]
        %v290 = vld [vmem:[%s1 + $0x8] sm:$0xf]
        %v294 = vunpack.c.l.b16 %v288
        %v295 = vunpack.c.l.b16 %v289
        %v296 = vunpack.c.l.b16 %v290
        %v297 = vpack.c.b16 %v295, %v294
        %v298 = vpack.c.b16 %v296, %v296
        %v303 = vunpack.c.l.b16 %v284
        %v304 = vunpack.c.l.b16 %v285
        %v305 = vunpack.c.l.b16 %v286
        %v306 = vunpack.c.l.b16 %v287
        %v307 = vpack.c.b16 %v304, %v303
        %v308 = vpack.c.b16 %v306, %v305
        %309 = vrot.lane.b32.xlu0 %v307, 64
        %v310 = vpop.permute.xlu0 %309
        %311 = vrot.lane.b32.xlu0 %v308, 64
        %v312 = vpop.permute.xlu0 %311
        %v316 = vsel %vm226, %v297, 0
        %v319 = vsel %vm226, %v298, 0
        %321 = vmatprep.subr.bf16.mxu0 0
        %322 = vmatpush1.bf16.msra.mxu0 %v310
        %323 = vmatprep.subr.bf16.mxu0 0
        %324 = vmatpush1.bf16.msra.mxu0 %v312
        %325 = vmatprep.subr.bf16.mxu0 0
        %326 = vmatpush1.bf16.msra.mxu0 0
        %327 = vmatprep.subr.bf16.mxu0 0
        %328 = vmatpush1.bf16.msra.mxu0 0
        %329 = vmatprep.subr.bf16.mxu0 0
        %330 = vmatpush1.bf16.msra.mxu0 0
        %331 = vmatprep.subr.bf16.mxu0 0
        %332 = vmatpush1.bf16.msra.mxu0 0
        %333 = vmatprep.subr.bf16.mxu0 0
        %334 = vmatpush1.bf16.msra.mxu0 0
        %335 = vmatprep.subr.bf16.mxu0 0
        %336 = vmatpush1.bf16.msra.mxu0 0
        %337 = vmatprep.subr.bf16.mxu0 0
        %338 = vmatpush1.bf16.msra.mxu0 0
        %339 = vmatprep.subr.bf16.mxu0 0
        %340 = vmatpush1.bf16.msra.mxu0 0
        %341 = vmatprep.subr.bf16.mxu0 0
        %342 = vmatpush1.bf16.msra.mxu0 0
        %343 = vmatprep.subr.bf16.mxu0 0
        %344 = vmatpush1.bf16.msra.mxu0 0
        %345 = vmatprep.subr.bf16.mxu0 0
        %346 = vmatpush1.bf16.msra.mxu0 0
        %347 = vmatprep.subr.bf16.mxu0 0
        %348 = vmatpush1.bf16.msra.mxu0 0
        %349 = vmatprep.subr.bf16.mxu0 0
        %350 = vmatpush1.bf16.msra.mxu0 0
        %351 = vmatprep.subr.bf16.mxu0 0
        %352 = vmatpush1.bf16.msra.mxu0 0
        %353 = vmatprep.mubr.bf16.mxu0 0
        %354 = vmatmul.mubr.bf16.gmra.mrb[0].mxu0 %v316
        %v355 = vpop.f32.mrb[0].mxu0
        %v356 = vadd.f32 0.0, %v355
        %v357 = vpop.f32.mrb[0].mxu0
        %v358 = vpop.f32.mrb[0].mxu0
        %v359 = vadd.f32 0.0, %v358
        %v360 = vpop.f32.mrb[0].mxu0
        %361 = vmatprep.mubr.bf16.mxu0 0
        %362 = vmatmul.mubr.bf16.gmra.mrb[0].mxu0 %v319
        %v363 = vpop.f32.mrb[0].mxu0
        %v364 = vadd.f32 0.0, %v363
        %v365 = vpop.f32.mrb[0].mxu0
        %v366 = vpop.f32.mrb[0].mxu0
        %v367 = vpop.f32.mrb[0].mxu0
        %368 = vdwg.mxu0
        %v369 = vpack.c.bf16 %v356, %v356
        %v372 = vunpack.c.l.s4 1983009808
        %v373 = vunpack.c.0.s8 %v372
        %v374 = vlaneseq
        %v375 = vshrl.u32 %v374, 7
        %v376 = vsub.s32 %v373, %v375
        %v377 = vrot.slane %v369, %v376
        %378 = vrot.lane.b32.xlu0 %v377, 64
        %v379 = vpop.permute.xlu0 %378
        %vm381 = vcmask 1041920
        %382 = vst.msk [vmem:[#allocation2] sm:$0x3] %vm381, %v379
        %v383 = vmax.f32 %v268, %v356
        %v384 = vmax.f32 %v271, %v359
        %v385 = vmax.f32 %v276, %v364
        %v386 = vld [vmem:[%s183 + $0x4] sm:$0xf]
        %v387 = vld [vmem:[%s183 + $0xc] sm:$0xf]
        %v388 = vld [vmem:[%s183 + $0x14] sm:$0xf]
        %v389 = vld [vmem:[%s183 + $0x1c] sm:$0xf]
        %v390 = vld [vmem:[%s1] sm:$0xf]
        %v391 = vld [vmem:[%s1 + $0x4] sm:$0xf]
        %v392 = vld [vmem:[%s1 + $0x8] sm:$0xf]
        %v396 = vunpack.c.l.b16 %v390
        %v397 = vunpack.c.l.b16 %v391
        %v398 = vunpack.c.l.b16 %v392
        %v399 = vpack.c.b16 %v397, %v396
        %v400 = vpack.c.b16 %v398, %v398
        %v405 = vunpack.c.l.b16 %v386
        %v406 = vunpack.c.l.b16 %v387
        %v407 = vunpack.c.l.b16 %v388
        %v408 = vunpack.c.l.b16 %v389
        %v409 = vpack.c.b16 %v406, %v405
        %v410 = vpack.c.b16 %v408, %v407
        %v414 = vsel %vm226, %v399, 0
        %v417 = vsel %vm226, %v400, 0
        %419 = vmatprep.subr.bf16.mxu0 0
        %420 = vmatpush1.bf16.msra.mxu0 %v409
        %421 = vmatprep.subr.bf16.mxu0 0
        %422 = vmatpush1.bf16.msra.mxu0 %v410
        %423 = vmatprep.subr.bf16.mxu0 0
        %424 = vmatpush1.bf16.msra.mxu0 0
        %425 = vmatprep.subr.bf16.mxu0 0
        %426 = vmatpush1.bf16.msra.mxu0 0
        %427 = vmatprep.subr.bf16.mxu0 0
        %428 = vmatpush1.bf16.msra.mxu0 0
        %429 = vmatprep.subr.bf16.mxu0 0
        %430 = vmatpush1.bf16.msra.mxu0 0
        %431 = vmatprep.subr.bf16.mxu0 0
        %432 = vmatpush1.bf16.msra.mxu0 0
        %433 = vmatprep.subr.bf16.mxu0 0
        %434 = vmatpush1.bf16.msra.mxu0 0
        %435 = vmatprep.subr.bf16.mxu0 0
        %436 = vmatpush1.bf16.msra.mxu0 0
        %437 = vmatprep.subr.bf16.mxu0 0
        %438 = vmatpush1.bf16.msra.mxu0 0
        %439 = vmatprep.subr.bf16.mxu0 0
        %440 = vmatpush1.bf16.msra.mxu0 0
        %441 = vmatprep.subr.bf16.mxu0 0
        %442 = vmatpush1.bf16.msra.mxu0 0
        %443 = vmatprep.subr.bf16.mxu0 0
        %444 = vmatpush1.bf16.msra.mxu0 0
        %445 = vmatprep.subr.bf16.mxu0 0
        %446 = vmatpush1.bf16.msra.mxu0 0
        %447 = vmatprep.subr.bf16.mxu0 0
        %448 = vmatpush1.bf16.msra.mxu0 0
        %449 = vmatprep.subr.bf16.mxu0 0
        %450 = vmatpush1.bf16.msra.mxu0 0
        %451 = vmatprep.mubr.bf16.mxu0 0
        %452 = vmatmul.mubr.bf16.gmra.mrb[0].mxu0 %v414
        %v453 = vpop.f32.mrb[0].mxu0
        %v454 = vadd.f32 0.0, %v453
        %v455 = vpop.f32.mrb[0].mxu0
        %v456 = vpop.f32.mrb[0].mxu0
        %v457 = vadd.f32 0.0, %v456
        %v458 = vpop.f32.mrb[0].mxu0
        %459 = vmatprep.mubr.bf16.mxu0 0
        %460 = vmatmul.mubr.bf16.gmra.mrb[0].mxu0 %v417
        %v461 = vpop.f32.mrb[0].mxu0
        %v462 = vadd.f32 0.0, %v461
        %v463 = vpop.f32.mrb[0].mxu0
        %v464 = vpop.f32.mrb[0].mxu0
        %v465 = vpop.f32.mrb[0].mxu0
        %466 = vdwg.mxu0
        %v467 = vpack.c.bf16 %v454, %v454
        %468 = vst.msk [vmem:[#allocation2 + $0x2] sm:$0x3] %vm282, %v467
        %v469 = vmax.f32 %v383, %v454
        %v470 = vmax.f32 %v384, %v457
        %v471 = vmax.f32 %v385, %v462
        %v472 = vld [vmem:[%s183 + $0x4] sm:$0xf]
        %v473 = vld [vmem:[%s183 + $0xc] sm:$0xf]
        %v474 = vld [vmem:[%s183 + $0x14] sm:$0xf]
        %v475 = vld [vmem:[%s183 + $0x1c] sm:$0xf]
        %v476 = vld [vmem:[%s1] sm:$0xf]
        %v477 = vld [vmem:[%s1 + $0x4] sm:$0xf]
        %v478 = vld [vmem:[%s1 + $0x8] sm:$0xf]
        %v482 = vunpack.c.l.b16 %v476
        %v483 = vunpack.c.l.b16 %v477
        %v484 = vunpack.c.l.b16 %v478
        %v485 = vpack.c.b16 %v483, %v482
        %v486 = vpack.c.b16 %v484, %v484
        %v491 = vunpack.c.l.b16 %v472
        %v492 = vunpack.c.l.b16 %v473
        %v493 = vunpack.c.l.b16 %v474
        %v494 = vunpack.c.l.b16 %v475
        %v495 = vpack.c.b16 %v492, %v491
        %v496 = vpack.c.b16 %v494, %v493
        %497 = vrot.lane.b32.xlu0 %v495, 64
        %v498 = vpop.permute.xlu0 %497
        %499 = vrot.lane.b32.xlu0 %v496, 64
        %v500 = vpop.permute.xlu0 %499
        %v504 = vsel %vm226, %v485, 0
        %v507 = vsel %vm226, %v486, 0
        %509 = vmatprep.subr.bf16.mxu0 0
        %510 = vmatpush1.bf16.msra.mxu0 %v498
        %511 = vmatprep.subr.bf16.mxu0 0
        %512 = vmatpush1.bf16.msra.mxu0 %v500
        %513 = vmatprep.subr.bf16.mxu0 0
        %514 = vmatpush1.bf16.msra.mxu0 0
        %515 = vmatprep.subr.bf16.mxu0 0
        %516 = vmatpush1.bf16.msra.mxu0 0
        %517 = vmatprep.subr.bf16.mxu0 0
        %518 = vmatpush1.bf16.msra.mxu0 0
        %519 = vmatprep.subr.bf16.mxu0 0
        %520 = vmatpush1.bf16.msra.mxu0 0
        %521 = vmatprep.subr.bf16.mxu0 0
        %522 = vmatpush1.bf16.msra.mxu0 0
        %523 = vmatprep.subr.bf16.mxu0 0
        %524 = vmatpush1.bf16.msra.mxu0 0
        %525 = vmatprep.subr.bf16.mxu0 0
        %526 = vmatpush1.bf16.msra.mxu0 0
        %527 = vmatprep.subr.bf16.mxu0 0
        %528 = vmatpush1.bf16.msra.mxu0 0
        %529 = vmatprep.subr.bf16.mxu0 0
        %530 = vmatpush1.bf16.msra.mxu0 0
        %531 = vmatprep.subr.bf16.mxu0 0
        %532 = vmatpush1.bf16.msra.mxu0 0
        %533 = vmatprep.subr.bf16.mxu0 0
        %534 = vmatpush1.bf16.msra.mxu0 0
        %535 = vmatprep.subr.bf16.mxu0 0
        %536 = vmatpush1.bf16.msra.mxu0 0
        %537 = vmatprep.subr.bf16.mxu0 0
        %538 = vmatpush1.bf16.msra.mxu0 0
        %539 = vmatprep.subr.bf16.mxu0 0
        %540 = vmatpush1.bf16.msra.mxu0 0
        %541 = vmatprep.mubr.bf16.mxu0 0
        %542 = vmatmul.mubr.bf16.gmra.mrb[0].mxu0 %v504
        %v543 = vpop.f32.mrb[0].mxu0
        %v544 = vadd.f32 0.0, %v543
        %v545 = vpop.f32.mrb[0].mxu0
        %v546 = vpop.f32.mrb[0].mxu0
        %v547 = vadd.f32 0.0, %v546
        %v548 = vpop.f32.mrb[0].mxu0
        %549 = vmatprep.mubr.bf16.mxu0 0
        %550 = vmatmul.mubr.bf16.gmra.mrb[0].mxu0 %v507
        %v551 = vpop.f32.mrb[0].mxu0
        %v552 = vadd.f32 0.0, %v551
        %v553 = vpop.f32.mrb[0].mxu0
        %v554 = vpop.f32.mrb[0].mxu0
        %v555 = vpop.f32.mrb[0].mxu0
        %556 = vdwg.mxu0
        %v557 = vpack.c.bf16 %v544, %v544
        %v560 = vunpack.c.l.s4 1983009808
        %v561 = vunpack.c.0.s8 %v560
        %v562 = vlaneseq
        %v563 = vshrl.u32 %v562, 7
        %v564 = vsub.s32 %v561, %v563
        %v565 = vrot.slane %v557, %v564
        %566 = vrot.lane.b32.xlu0 %v565, 64
        %v567 = vpop.permute.xlu0 %566
        %569 = vst.msk [vmem:[#allocation2 + $0x2] sm:$0x3] %vm381, %v567
        %v570 = vmax.f32 %v469, %v544
        %v571 = vmax.f32 %v470, %v547
        %v572 = vmax.f32 %v471, %v552
        %v573 = vpack.c.bf16 %v570, %v570
        %v576 = vunpack.c.l.s4 1983009808
        %v577 = vunpack.c.0.s8 %v576
        %v578 = vlaneseq
        %v579 = vshrl.u32 %v578, 7
        %v580 = vsub.s32 %v577, %v579
        %v581 = vrot.slane %v573, %v580
        %v582 = vcombine.high %v581, %v581
        %584 = vst.msk [vmem:[#allocation3] sm:$0x3] %vm282, %v582
        %v585 = vpack.c.bf16 %v572, %v571
        %vm586 = vcmask 523264
        %587 = vst.msk [vmem:[#allocation4] sm:$0xff] %vm586, %v585
      $region36: #{self_attn_pallas.1} parent=31 // pred_fallthru
        _
      %s588 = smul.u32 %s19, 256
      %s589 = sshra.s32 %s588, 7
      %s590 = sand.u32 %s588, 127
      %s591 = smul.addr %s589, 2
      %s592 = scalar_lea.vmem [#allocation2], %s591
      %v593 = vld [vmem:[%s592] sm:$0xf]
      %v594 = vld [vmem:[#allocation3] sm:$0x3]
      %595 = vxpose.xlu0.c.b16.start [1/8] %v594, 128
      %596 = vxpose.xlu0.c.b16.cont [2/8] 0, 128
      %597 = vxpose.xlu0.c.b16.cont [3/8] 0, 128
      %598 = vxpose.xlu0.c.b16.cont [4/8] 0, 128
      %599 = vxpose.xlu0.c.b16.cont [5/8] 0, 128
      %600 = vxpose.xlu0.c.b16.cont [6/8] 0, 128
      %601 = vxpose.xlu0.c.b16.cont [7/8] 0, 128
      %602 = vxpose.xlu0.c.b16.end [8/8] 0, 128
      %v603 = vpop.trf.xlu0
      %v604 = vpop.trf.xlu0
      %v605 = vpop.trf.xlu0
      %v606 = vpop.trf.xlu0
      %v607 = vpop.trf.xlu0
      %v608 = vpop.trf.xlu0
      %v609 = vpop.trf.xlu0
      %v610 = vpop.trf.xlu0
      %v613 = vunpack.c.l.s4 1983009808
      %v614 = vunpack.c.0.s8 %v613
      %v615 = vlaneseq
      %v616 = vshrl.u32 %v615, 7
      %v617 = vsub.s32 %v614, %v616
      %v618 = vrot.slane %v593, %v617
      %v619 = vcombine.high %v618, %v618
      %vm620 = vcmask 31744
      %v622 = vsel %vm620, %v603, 0
      %v625 = vsel %vm620, %v604, 0
      %v628 = vsel %vm620, %v605, 0
      %v631 = vsel %vm620, %v606, 0
      %vm633 = vcmask 1041408
      %v635 = vsel %vm633, %v618, 0
      %v638 = vsel %vm633, %v619, 0
      %640 = vmatprep.subr.bf16.mxu0 %v638
      %641 = vmatpush1.bf16.msra.mxu0 %v635
      %642 = vmatprep.subr.bf16.mxu0 0
      %643 = vmatpush1.bf16.msra.mxu0 0
      %644 = vmatprep.subr.bf16.mxu0 0
      %645 = vmatpush1.bf16.msra.mxu0 0
      %646 = vmatprep.subr.bf16.mxu0 0
      %647 = vmatpush1.bf16.msra.mxu0 0
      %648 = vmatprep.subr.bf16.mxu0 0
      %649 = vmatpush1.bf16.msra.mxu0 0
      %650 = vmatprep.subr.bf16.mxu0 0
      %651 = vmatpush1.bf16.msra.mxu0 0
      %652 = vmatprep.subr.bf16.mxu0 0
      %653 = vmatpush1.bf16.msra.mxu0 0
      %654 = vmatprep.subr.bf16.mxu0 0
      %655 = vmatpush1.bf16.msra.mxu0 0
      %656 = vmatprep.subr.bf16.mxu0 0
      %657 = vmatpush1.bf16.msra.mxu0 0
      %658 = vmatprep.subr.bf16.mxu0 0
      %659 = vmatpush1.bf16.msra.mxu0 0
      %660 = vmatprep.subr.bf16.mxu0 0
      %661 = vmatpush1.bf16.msra.mxu0 0
      %662 = vmatprep.subr.bf16.mxu0 0
      %663 = vmatpush1.bf16.msra.mxu0 0
      %664 = vmatprep.subr.bf16.mxu0 0
      %665 = vmatpush1.bf16.msra.mxu0 0
      %666 = vmatprep.subr.bf16.mxu0 0
      %667 = vmatpush1.bf16.msra.mxu0 0
      %668 = vmatprep.subr.bf16.mxu0 0
      %669 = vmatpush1.bf16.msra.mxu0 0
      %670 = vmatprep.subr.bf16.mxu0 0
      %671 = vmatpush1.bf16.msra.mxu0 0
      %672 = vmatprep.mubr.bf16.mxu0 0
      %673 = vmatmul.mubr.bf16.gmra.mrb[0].mxu0 %v622
      %v674 = vpop.f32.mrb[0].mxu0
      %v675 = vadd.f32 0.0, %v674
      %v676 = vpop.f32.mrb[0].mxu0
      %v677 = vadd.f32 0.0, %v676
      %v678 = vpop.f32.mrb[0].mxu0
      %v679 = vadd.f32 0.0, %v678
      %v680 = vpop.f32.mrb[0].mxu0
      %v681 = vadd.f32 0.0, %v680
      %682 = vmatprep.mubr.bf16.mxu0 0
      %683 = vmatmul.mubr.bf16.gmra.mrb[0].mxu0 %v625
      %v684 = vpop.f32.mrb[0].mxu0
      %v685 = vadd.f32 0.0, %v684
      %v686 = vpop.f32.mrb[0].mxu0
      %v687 = vadd.f32 0.0, %v686
      %v688 = vpop.f32.mrb[0].mxu0
      %v689 = vadd.f32 0.0, %v688
      %v690 = vpop.f32.mrb[0].mxu0
      %v691 = vadd.f32 0.0, %v690
      %692 = vmatprep.mubr.bf16.mxu0 0
      %693 = vmatmul.mubr.bf16.gmra.mrb[0].mxu0 %v628
      %v694 = vpop.f32.mrb[0].mxu0
      %v695 = vadd.f32 0.0, %v694
      %v696 = vpop.f32.mrb[0].mxu0
      %v697 = vadd.f32 0.0, %v696
      %v698 = vpop.f32.mrb[0].mxu0
      %v699 = vadd.f32 0.0, %v698
      %v700 = vpop.f32.mrb[0].mxu0
      %v701 = vadd.f32 0.0, %v700
      %702 = vmatprep.mubr.bf16.mxu0 0
      %703 = vmatmul.mubr.bf16.gmra.mrb[0].mxu0 %v631
      %v704 = vpop.f32.mrb[0].mxu0
      %v705 = vadd.f32 0.0, %v704
      %v706 = vpop.f32.mrb[0].mxu0
      %v707 = vadd.f32 0.0, %v706
      %v708 = vpop.f32.mrb[0].mxu0
      %v709 = vadd.f32 0.0, %v708
      %v710 = vpop.f32.mrb[0].mxu0
      %v711 = vadd.f32 0.0, %v710
      %712 = vdwg.mxu0
      %v713 = vmax.f32 %v675, %v685
      %v714 = vmax.f32 %v679, %v689
      %v715 = vmax.f32 %v713, %v695
      %v716 = vmax.f32 %v714, %v699
      %v717 = vmax.f32 %v715, %v705
      %v718 = vmax.f32 %v716, %v709
      %v719 = vmax.f32 %v717, %v718
      %v720 = vrot.slane %v719, 4
      %v721 = vmax.f32 %v719, %v720
      %v722 = vrot.slane %v721, 2
      %v723 = vmax.f32 %v721, %v722
      %v724 = vrot.slane %v723, 1
      %v725 = vmax.f32 %v723, %v724
      %v726 = vmax.f32 %v677, %v687
      %v727 = vmax.f32 %v681, %v691
      %v728 = vmax.f32 %v726, %v697
      %v729 = vmax.f32 %v727, %v701
      %v730 = vmax.f32 %v728, %v707
      %v731 = vmax.f32 %v729, %v711
      %v732 = vmax.f32 %v730, %v731
      %v733 = vrot.slane %v732, 4
      %v734 = vmax.f32 %v732, %v733
      %v735 = vrot.slane %v734, 2
      %v736 = vmax.f32 %v734, %v735
      %v737 = vrot.slane %v736, 1
      %v738 = vmax.f32 %v736, %v737
      %v739 = vsub.f32 %v675, %v725
      %v740 = vsub.f32 %v677, %v738
      %v741 = vsub.f32 %v679, %v725
      %v742 = vsub.f32 %v681, %v738
      %v743 = vsub.f32 %v685, %v725
      %v744 = vsub.f32 %v687, %v738
      %v745 = vsub.f32 %v689, %v725
      %v746 = vsub.f32 %v691, %v738
      %v747 = vsub.f32 %v695, %v725
      %v748 = vsub.f32 %v697, %v738
      %v749 = vsub.f32 %v699, %v725
      %v750 = vsub.f32 %v701, %v738
      %v751 = vsub.f32 %v705, %v725
      %v752 = vsub.f32 %v707, %v738
      %v753 = vsub.f32 %v709, %v725
      %v754 = vsub.f32 %v711, %v738
      %v755 = vmul.f32 %v739, 1.442695
      %v756 = vpow.pop %v755
      %v757 = vmul.f32 %v740, 1.442695
      %v758 = vpow.pop %v757
      %v759 = vmul.f32 %v741, 1.442695
      %v760 = vpow.pop %v759
      %v761 = vmul.f32 %v742, 1.442695
      %v762 = vpow.pop %v761
      %v763 = vmul.f32 %v743, 1.442695
      %v764 = vpow.pop %v763
      %v765 = vmul.f32 %v744, 1.442695
      %v766 = vpow.pop %v765
      %v767 = vmul.f32 %v745, 1.442695
      %v768 = vpow.pop %v767
      %v769 = vmul.f32 %v746, 1.442695
      %v770 = vpow.pop %v769
      %v771 = vmul.f32 %v747, 1.442695
      %v772 = vpow.pop %v771
      %v773 = vmul.f32 %v748, 1.442695
      %v774 = vpow.pop %v773
      %v775 = vmul.f32 %v749, 1.442695
      %v776 = vpow.pop %v775
      %v777 = vmul.f32 %v750, 1.442695
      %v778 = vpow.pop %v777
      %v779 = vmul.f32 %v751, 1.442695
      %v780 = vpow.pop %v779
      %v781 = vmul.f32 %v752, 1.442695
      %v782 = vpow.pop %v781
      %v783 = vmul.f32 %v753, 1.442695
      %v784 = vpow.pop %v783
      %v785 = vmul.f32 %v754, 1.442695
      %v786 = vpow.pop %v785
      %v787 = vadd.f32 %v756, %v760
      %v788 = vadd.f32 %v787, %v764
      %v789 = vadd.f32 %v788, %v768
      %v790 = vadd.f32 %v789, %v772
      %v791 = vadd.f32 %v790, %v776
      %v792 = vadd.f32 %v791, %v780
      %v793 = vadd.f32 %v792, %v784
      %v794 = vrot.slane %v793, 4
      %v795 = vadd.f32 %v793, %v794
      %v796 = vrot.slane %v795, 2
      %v797 = vadd.f32 %v795, %v796
      %v798 = vrot.slane %v797, 1
      %v799 = vadd.f32 %v797, %v798
      %v800 = vadd.f32 %v758, %v762
      %v801 = vadd.f32 %v800, %v766
      %v802 = vadd.f32 %v801, %v770
      %v803 = vadd.f32 %v802, %v774
      %v804 = vadd.f32 %v803, %v778
      %v805 = vadd.f32 %v804, %v782
      %v806 = vadd.f32 %v805, %v786
      %v807 = vrot.slane %v806, 4
      %v808 = vadd.f32 %v806, %v807
      %v809 = vrot.slane %v808, 2
      %v810 = vadd.f32 %v808, %v809
      %v811 = vrot.slane %v810, 1
      %v812 = vadd.f32 %v810, %v811
      %v813 = vld [vmem:[#allocation4] sm:$0xff]
      %v814 = vpack.c.bf16 %v760, %v756
      %v815 = vpack.c.bf16 %v762, %v758
      %v816 = vpack.c.bf16 %v768, %v764
      %v817 = vpack.c.bf16 %v770, %v766
      %v818 = vpack.c.bf16 %v776, %v772
      %v819 = vpack.c.bf16 %v778, %v774
      %v820 = vpack.c.bf16 %v784, %v780
      %v821 = vpack.c.bf16 %v786, %v782
      %vm822 = vcmask 523264
      %v824 = vsel %vm822, %v813, 0
      %826 = vmatprep.subr.bf16.mxu0 %v815
      %827 = vmatpush1.bf16.msra.mxu0 %v814
      %828 = vmatprep.subr.bf16.mxu0 %v817
      %829 = vmatpush1.bf16.msra.mxu0 %v816
      %830 = vmatprep.subr.bf16.mxu0 %v819
      %831 = vmatpush1.bf16.msra.mxu0 %v818
      %832 = vmatprep.subr.bf16.mxu0 %v821
      %833 = vmatpush1.bf16.msra.mxu0 %v820
      %834 = vmatprep.subr.bf16.mxu0 0
      %835 = vmatpush1.bf16.msra.mxu0 0
      %836 = vmatprep.subr.bf16.mxu0 0
      %837 = vmatpush1.bf16.msra.mxu0 0
      %838 = vmatprep.subr.bf16.mxu0 0
      %839 = vmatpush1.bf16.msra.mxu0 0
      %840 = vmatprep.subr.bf16.mxu0 0
      %841 = vmatpush1.bf16.msra.mxu0 0
      %842 = vmatprep.subr.bf16.mxu0 0
      %843 = vmatpush1.bf16.msra.mxu0 0
      %844 = vmatprep.subr.bf16.mxu0 0
      %845 = vmatpush1.bf16.msra.mxu0 0
      %846 = vmatprep.subr.bf16.mxu0 0
      %847 = vmatpush1.bf16.msra.mxu0 0
      %848 = vmatprep.subr.bf16.mxu0 0
      %849 = vmatpush1.bf16.msra.mxu0 0
      %850 = vmatprep.subr.bf16.mxu0 0
      %851 = vmatpush1.bf16.msra.mxu0 0
      %852 = vmatprep.subr.bf16.mxu0 0
      %853 = vmatpush1.bf16.msra.mxu0 0
      %854 = vmatprep.subr.bf16.mxu0 0
      %855 = vmatpush1.bf16.msra.mxu0 0
      %856 = vmatprep.subr.bf16.mxu0 0
      %857 = vmatpush1.bf16.msra.mxu0 0
      %858 = vmatprep.mubr.bf16.mxu0 0
      %859 = vmatmul.mubr.bf16.gmra.mrb[0].mxu0 %v824
      %v860 = vpop.f32.mrb[0].mxu0
      %v861 = vadd.f32 0.0, %v860
      %v862 = vpop.f32.mrb[0].mxu0
      %v863 = vadd.f32 0.0, %v862
      %v864 = vpop.f32.mrb[0].mxu0
      %v865 = vadd.f32 0.0, %v864
      %v866 = vpop.f32.mrb[0].mxu0
      %v867 = vadd.f32 0.0, %v866
      %868 = vdwg.mxu0
      %v869 = vrcp.pop %v799
      %v870 = vrcp.pop %v812
      %v871 = vmul.f32 %v861, %v869
      %v872 = vmul.f32 %v863, %v870
      %v873 = vmul.f32 %v865, %v869
      %v874 = vmul.f32 %v867, %v870
      %v875 = vld [vmem:[%s2] sm:$0xf]
      %v876 = vld [vmem:[%s2 + $0x4] sm:$0xf]
      %v877 = vld [vmem:[%s2 + $0x8] sm:$0xf]
      %v878 = vld [vmem:[%s2 + $0xc] sm:$0xf]
      %v879 = vpack.c.bf16 %v873, %v871
      %v880 = vpack.c.bf16 %v874, %v872
      %v885 = vunpack.c.l.b16 %v875
      %v886 = vunpack.c.l.b16 %v876
      %v887 = vunpack.c.l.b16 %v877
      %v888 = vunpack.c.l.b16 %v878
      %v889 = vpack.c.b16 %v886, %v885
      %v890 = vpack.c.b16 %v888, %v887
      %vm891 = vcmask 130048
      %v893 = vsel %vm891, %v889, 0
      %v896 = vsel %vm891, %v890, 0
      %898 = vmatprep.subr.bf16.mxu0 %v880
      %899 = vmatpush1.bf16.msra.mxu0 %v879
      %900 = vmatprep.subr.bf16.mxu0 0
      %901 = vmatpush1.bf16.msra.mxu0 0
      %902 = vmatprep.subr.bf16.mxu0 0
      %903 = vmatpush1.bf16.msra.mxu0 0
      %904 = vmatprep.subr.bf16.mxu0 0
      %905 = vmatpush1.bf16.msra.mxu0 0
      %906 = vmatprep.subr.bf16.mxu0 0
      %907 = vmatpush1.bf16.msra.mxu0 0
      %908 = vmatprep.subr.bf16.mxu0 0
      %909 = vmatpush1.bf16.msra.mxu0 0
      %910 = vmatprep.subr.bf16.mxu0 0
      %911 = vmatpush1.bf16.msra.mxu0 0
      %912 = vmatprep.subr.bf16.mxu0 0
      %913 = vmatpush1.bf16.msra.mxu0 0
      %914 = vmatprep.subr.bf16.mxu0 0
      %915 = vmatpush1.bf16.msra.mxu0 0
      %916 = vmatprep.subr.bf16.mxu0 0
      %917 = vmatpush1.bf16.msra.mxu0 0
      %918 = vmatprep.subr.bf16.mxu0 0
      %919 = vmatpush1.bf16.msra.mxu0 0
      %920 = vmatprep.subr.bf16.mxu0 0
      %921 = vmatpush1.bf16.msra.mxu0 0
      %922 = vmatprep.subr.bf16.mxu0 0
      %923 = vmatpush1.bf16.msra.mxu0 0
      %924 = vmatprep.subr.bf16.mxu0 0
      %925 = vmatpush1.bf16.msra.mxu0 0
      %926 = vmatprep.subr.bf16.mxu0 0
      %927 = vmatpush1.bf16.msra.mxu0 0
      %928 = vmatprep.subr.bf16.mxu0 0
      %929 = vmatpush1.bf16.msra.mxu0 0
      %930 = vmatprep.mubr.bf16.mxu0 0
      %931 = vmatmul.mubr.bf16.gmra.mrb[0].mxu0 %v893
      %v932 = vpop.f32.mrb[0].mxu0
      %v933 = vadd.f32 0.0, %v932
      %v934 = vpop.f32.mrb[0].mxu0
      %v935 = vadd.f32 0.0, %v934
      %v936 = vpop.f32.mrb[0].mxu0
      %v937 = vadd.f32 0.0, %v936
      %v938 = vpop.f32.mrb[0].mxu0
      %v939 = vadd.f32 0.0, %v938
      %940 = vmatprep.mubr.bf16.mxu0 0
      %941 = vmatmul.mubr.bf16.gmra.mrb[0].mxu0 %v896
      %v942 = vpop.f32.mrb[0].mxu0
      %v943 = vadd.f32 0.0, %v942
      %v944 = vpop.f32.mrb[0].mxu0
      %v945 = vadd.f32 0.0, %v944
      %v946 = vpop.f32.mrb[0].mxu0
      %v947 = vadd.f32 0.0, %v946
      %v948 = vpop.f32.mrb[0].mxu0
      %v949 = vadd.f32 0.0, %v948
      %950 = vdwg.mxu0
      %s951 = smul.addr %s589, 4
      %s952 = scalar_lea.vmem %s183, %s951
      %v953 = vld [vmem:[%s952] sm:$0xff]
      %v954 = vld [vmem:[%s952 + $0x8] sm:$0xff]
      %v955 = vld [vmem:[%s952 + $0x10] sm:$0xff]
      %v956 = vld [vmem:[%s952 + $0x18] sm:$0xff]
      %v957 = vunpack.c.l.bf16 %v953
      %v958 = vunpack.c.h.bf16 %v953
      %v959 = vunpack.c.l.bf16 %v954
      %v960 = vunpack.c.h.bf16 %v954
      %v961 = vunpack.c.l.bf16 %v955
      %v962 = vunpack.c.h.bf16 %v955
      %v963 = vunpack.c.l.bf16 %v956
      %v964 = vunpack.c.h.bf16 %v956
      %v965 = vadd.f32 %v957, %v933
      %v966 = vadd.f32 %v958, %v935
      %v967 = vadd.f32 %v959, %v937
      %v968 = vadd.f32 %v960, %v939
      %v969 = vadd.f32 %v961, %v943
      %v970 = vadd.f32 %v962, %v945
      %v971 = vadd.f32 %v963, %v947
      %v972 = vadd.f32 %v964, %v949
      %973 = vst [vmem:[%s192] sm:$0xff] %v965
      %974 = vst [vmem:[%s192 + $0x8] sm:$0xff] %v966
      %975 = vst [vmem:[%s192 + $0x10] sm:$0xff] %v967
      %976 = vst [vmem:[%s192 + $0x18] sm:$0xff] %v968
      %977 = vst [vmem:[%s192 + $0x20] sm:$0xff] %v969
      %978 = vst [vmem:[%s192 + $0x28] sm:$0xff] %v970
      %979 = vst [vmem:[%s192 + $0x30] sm:$0xff] %v971
      %980 = vst [vmem:[%s192 + $0x38] sm:$0xff] %v972
      %s981 = smul.u32 2, %s19
      %p982 = scmp.lt.s32.totalorder %s18, 1
      %s983 = scalar_select %p982, %s18, 1
      %p984 = scmp.lt.s32.totalorder %s981, 1
      %s985 = scalar_select %p984, %s981, 1
      %s986 = smul.addr %s983, 8
      %s987 = sadd.s32 %s985, %s986
      %s988 = smul.addr %s987, 8
      %s989 = scalar_lea.vmem %s3, %s988
      // Predicated region
      $region37: #{self_attn_pallas.1} parent=31 // pred_check
        %p990 = pneg %p114
      $region38: #{self_attn_pallas.1} parent=31 // pred_check_branch
        %992 = sbr.rel (%p990) target = $region40
      $region39: #{self_attn_pallas.1} parent=31 // pred_region
        %s993 = smul.u32 2, %s19
      $region40: #{self_attn_pallas.1} parent=31 // pred_fallthru
        _
    $region32: #{self_attn_pallas.1} parent=5 // pred_fallthru
      _
    %p994 = scmp.le.s32.totalorder 2, %s9
    // Predicated region
    $region41: #{self_attn_pallas.1} parent=5 // pred_check
      %p995 = pneg %p994
    $region42: #{self_attn_pallas.1} parent=5 // pred_check_branch
      %997 = sbr.rel (%p995) target = $region44
    $region43: #{self_attn_pallas.1} parent=5 // pred_region
      %s998 = ssub.s32 %s9, 2
      // Predicated region
      $region45: #{self_attn_pallas.1} parent=43 // pred_check
        %p999 = pneg %p120
      $region46: #{self_attn_pallas.1} parent=43 // pred_check_branch
        %1001 = sbr.rel (%p999) target = $region48
      $region47: #{self_attn_pallas.1} parent=43 // pred_region
        %s1002 = smul.u32 2, %s21
        %p1003 = scmp.lt.s32.totalorder %s20, 1
        %s1004 = scalar_select %p1003, %s20, 1
        %p1005 = scmp.lt.s32.totalorder %s1002, 1
        %s1006 = scalar_select %p1005, %s1002, 1
        %s1007 = smul.addr %s1004, 8
        %s1008 = sadd.s32 %s1006, %s1007
        %s1009 = smul.addr %s1008, 8
        %s1010 = scalar_lea.vmem %s3, %s1009
      $region48: #{self_attn_pallas.1} parent=43 // pred_fallthru
        _
    $region44: #{self_attn_pallas.1} parent=5 // pred_fallthru
      _
  $region6: #{self_attn_pallas.1} parent=0 // loop_footer
    %s13 = sadd.s32 1, %s9
  $region7: #{self_attn_pallas.1} parent=0 // loop_footer_branch
    %8 = sbr.rel target = $region3
  $region8: #{self_attn_pallas.1} parent=0 // loop_exit
    _

</llo_original>
